<compile_context>
chip_gen: v5e
topology: v5e:2x2
jax: 0.10.0
libtpu: 0.0.40
codegen_flags: <defaults>
</compile_context>

<pallas_src>
import math

import jax
import jax.numpy as jnp
from jax.experimental import pallas as pl
from jax.experimental.pallas import tpu as pltpu


# ----------------------------- helpers -------------------------------------

def _round_up(n, m):
    return ((n + m - 1) // m) * m


def _cdiv(a, b):
    return (a + b - 1) // b


def _sublane(dtype):
    # Sublane multiple for packed dtypes: 8 (f32), 16 (bf16), 32 (int8/fp8).
    it = jnp.dtype(dtype).itemsize
    return max(8, 32 // it)


def _vmem_tile_bytes(rows, cols, dtype):
    # VMEM footprint of one buffer of a (rows, cols) tile, incl. layout padding.
    it = jnp.dtype(dtype).itemsize
    return _round_up(rows, _sublane(dtype)) * _round_up(cols, 128) * it


# ----------------------------- kernels -------------------------------------

def _flatten_head_matmul_kernel(x_ref, w_ref, b_ref, o_ref):
    # Single K step (weight resident across the whole grid): write output directly.
    o_ref[...] = (
        jnp.dot(x_ref[...], w_ref[...], preferred_element_type=jnp.float32)
        + b_ref[...]
    ).astype(o_ref.dtype)


def _flatten_head_matmul_acc_kernel(x_ref, w_ref, b_ref, o_ref, acc_ref):
    # Split-K: f32 VMEM accumulator, K is the innermost ("arbitrary") grid axis.
    k = pl.program_id(1)

    @pl.when(k == 0)
    def _():
        acc_ref[...] = jnp.zeros_like(acc_ref)

    acc_ref[...] += jnp.dot(x_ref[...], w_ref[...],
                            preferred_element_type=jnp.float32)

    @pl.when(k == pl.num_programs(1) - 1)
    def _():
        o_ref[...] = (acc_ref[...] + b_ref[...]).astype(o_ref.dtype)


# ----------------------------- init-time prep ------------------------------

_W_RESIDENT_BUDGET = 20 * 1024 * 1024  # 2x resident weight buffers
_X_TILE_BUDGET = 16 * 1024 * 1024      # 2x x tiles spanning all of K (resident path)
_W_TILE_BUDGET = 24 * 1024 * 1024      # 2x weight tiles (split-K path)


def prepare_flatten_head(weight, bias, *, compute_dtype=None,
                         tm_target=256, tk_target=2048):
    """One-time preparation of the FlattenHead linear parameters.

    Transposes / casts / pads the weight ONCE so the per-call hot path only
    runs the Pallas matmul kernel.  Returns a params dict consumed by
    flatten_head().

    weight: (dim_out, dim_in)  PyTorch nn.Linear layout
    bias:   (dim_out,)
    """
    dim_out, dim_in = weight.shape
    if compute_dtype is None:
        compute_dtype = weight.dtype
    compute_dtype = jnp.dtype(compute_dtype)
    it = compute_dtype.itemsize

    # N blocking: pad to a 128-lane multiple only when cheap (<= 12.5% extra
    # weight bytes); otherwise keep the full extent (masked output stores are
    # cheaper than inflating the dominant weight HBM stream).
    n_pad128 = _round_up(dim_out, 128)
    if (n_pad128 - dim_out) * 8 <= dim_out:
        n_blk = n_pad128
    else:
        n_blk = dim_out

    # K (reduction) blocking.
    k_pad128 = _round_up(dim_in, 128)
    weight_resident = (
        2 * k_pad128 * n_blk * it <= _W_RESIDENT_BUDGET
        and 2 * tm_target * k_pad128 * it <= _X_TILE_BUDGET)
    if weight_resident:
        tk = k_pad128                      # k_tiles == 1: weight DMAed once
    else:
        n_k = _cdiv(k_pad128, tk_target)   # near-even 128-multiple divisor
        tk = _round_up(_cdiv(k_pad128, n_k), 128)
        # Keep the double-buffered weight tile inside its VMEM budget.
        max_tk = max(128, (_W_TILE_BUDGET // (2 * n_blk * it)) // 128 * 128)
        tk = max(128, min(tk, max_tk))
    k_tiles = _cdiv(k_pad128, tk)
    k_pad = k_tiles * tk

    # Pre-transpose to (dim_in, dim_out) so the kernel computes a plain x @ w;
    # cast + pad once at init (hoisted out of the per-call path).
    w_t = jnp.asarray(weight).T.astype(compute_dtype)
    if (k_pad - dim_in) or (n_blk - dim_out):
        w_t = jnp.pad(w_t, ((0, k_pad - dim_in), (0, n_blk - dim_out)))
    b2d = jnp.asarray(bias).astype(jnp.float32).reshape(1, dim_out)
    if n_blk - dim_out:
        b2d = jnp.pad(b2d, ((0, 0), (0, n_blk - dim_out)))

    return dict(w_t=w_t, b2d=b2d, dim_in=dim_in, dim_out=dim_out,
                n_blk=n_blk, k_pad=k_pad, tk=tk, k_tiles=k_tiles,
                compute_dtype=compute_dtype, tm_target=tm_target)


# ----------------------------- forward -------------------------------------

def flatten_head(x, params):
    """FlattenHead forward: Flatten(start_dim=-2) -> Linear -> Dropout (eval identity).

    x: (batch, n_vars, d_model, patch_num) with d_model * patch_num == dim_in.
    returns (batch, n_vars, dim_out)
    """
    b, v, d, p = x.shape
    dim_in = d * p
    assert dim_in == params["dim_in"], "d_model * patch_num must equal dim_in"
    dim_out = params["dim_out"]
    n_blk = params["n_blk"]
    k_pad = params["k_pad"]
    tk = params["tk"]
    k_tiles = params["k_tiles"]
    cdt = params["compute_dtype"]
    tm_target = params["tm_target"]
    w_t = params["w_t"]
    b2d = params["b2d"]

    out_dtype = x.dtype
    M = b * v
    sub = _sublane(cdt)
    m_sub = _round_up(M, sub)

    # M tiling: cover M with tm_target-sized tiles; give the megacore (v7x two
    # TensorCores) at least two "parallel" programs when there is real work for
    # both, while keeping tiles divisor-sized (no near-empty trailing tile).
    n_m = _cdiv(m_sub, tm_target)
    if n_m < 2 and M >= 2 * sub:
        n_m = 2
    tm = _round_up(_cdiv(m_sub, n_m), sub)
    m_pad = n_m * tm

    # Layout glue (cast/pad only when they are not no-ops).
    x2d = x.reshape(M, dim_in)
    if x2d.dtype != cdt:
        x2d = x2d.astype(cdt)
    if (m_pad - M) or (k_pad - dim_in):
        x2d = jnp.pad(x2d, ((0, m_pad - M), (0, k_pad - dim_in)))

    in_specs = [
        pl.BlockSpec((tm, tk), lambda i, k: (i, k)),      # x tile
        pl.BlockSpec((tk, n_blk), lambda i, k: (k, 0)),   # pre-transposed weight
        pl.BlockSpec((1, n_blk), lambda i, k: (0, 0)),    # bias (f32)
    ]
    out_spec = pl.BlockSpec((tm, n_blk), lambda i, k: (i, 0))

    if k_tiles == 1:
        kernel = _flatten_head_matmul_kernel
        scratch = ()
        acc_bytes = 0
    else:
        kernel = _flatten_head_matmul_acc_kernel
        scratch = (pltpu.VMEM((tm, n_blk), jnp.float32),)
        acc_bytes = _vmem_tile_bytes(tm, n_blk, jnp.float32)

    # Scoped-VMEM requirement: double-buffered inputs/outputs + scratch.
    vmem_needed = (2 * _vmem_tile_bytes(tm, tk, cdt)
                   + 2 * _vmem_tile_bytes(tk, n_blk, cdt)
                   + 2 * _vmem_tile_bytes(1, n_blk, jnp.float32)
                   + 2 * _vmem_tile_bytes(tm, n_blk, out_dtype)
                   + acc_bytes)
    vmem_limit = max(vmem_needed + vmem_needed // 4 + (4 << 20), 32 << 20)

    w_bytes = w_t.size * w_t.dtype.itemsize
    cost = pl.CostEstimate(
        flops=2 * m_pad * k_pad * n_blk,
        transcendentals=0,
        bytes_accessed=(x2d.size * x2d.dtype.itemsize
                        # split-K re-reads the weight once per M tile; the
                        # resident path (k_tiles == 1) reads it once.
                        + w_bytes * (n_m if k_tiles > 1 else 1)
                        + b2d.size * b2d.dtype.itemsize
                        + m_pad * n_blk * jnp.dtype(out_dtype).itemsize))

    out_padded = pl.pallas_call(
        kernel,
        out_shape=jax.ShapeDtypeStruct((m_pad, n_blk), out_dtype),
        grid_spec=pltpu.PrefetchScalarGridSpec(
            num_scalar_prefetch=0,
            grid=(n_m, k_tiles),
            in_specs=in_specs,
            out_specs=out_spec,
            scratch_shapes=scratch,
        ),
        compiler_params=pltpu.CompilerParams(
            dimension_semantics=("parallel", "arbitrary"),
            vmem_limit_bytes=vmem_limit),
        cost_estimate=cost,
    )(x2d, w_t, b2d)

    # TODO(synk): training-mode dropout not emitted (eval-mode dropout is identity).
    out = out_padded
    if m_pad != M or n_blk != dim_out:
        out = out[:M, :dim_out]
    return out.reshape(b, v, dim_out)


def _reference(x, weight, bias):
    b, v, d, p = x.shape
    x2 = x.reshape(b, v, d * p)
    return jnp.einsum("bvi,oi->bvo", x2, weight) + bias


if __name__ == "__main__":
    # Small shapes consistent with the module:
    #   batch=2, n_vars=4, d_model=16, patch_num=8 -> dim_in = 128, dim_out = 32
    batch, n_vars, d_model, patch_num = 2, 4, 16, 8
    dim_in = d_model * patch_num
    dim_out = 32
    head_dropout = 0.1  # inference mode -> identity

    key = jax.random.PRNGKey(0)
    kx, kw, kb = jax.random.split(key, 3)

    x = jax.random.normal(kx, (batch, n_vars, d_model, patch_num), dtype=jnp.float32)
    # Deterministic Linear init (uniform like PyTorch default, fixed seed).
    bound = 1.0 / math.sqrt(dim_in)
    weight = jax.random.uniform(kw, (dim_out, dim_in), jnp.float32, -bound, bound)
    bias = jax.random.uniform(kb, (dim_out,), jnp.float32, -bound, bound)

    ref = _reference(x, weight, bias)

    # f32 compute path: weight prepared once ("init"), reused per call.
    params_f32 = prepare_flatten_head(weight, bias)
    out = jax.block_until_ready(flatten_head(x, params_f32))
    assert out.shape == (batch, n_vars, dim_out)
    assert jnp.allclose(out, ref, atol=1e-5, rtol=1e-5), "f32 mismatch vs reference"

    # bf16 compute path (halves x/weight HBM bytes; f32 accumulation on the MXU).
    params_bf16 = prepare_flatten_head(weight, bias, compute_dtype=jnp.bfloat16)
    out_bf16 = jax.block_until_ready(flatten_head(x, params_bf16))
    assert out_bf16.shape == (batch, n_vars, dim_out)
    assert jnp.allclose(out_bf16, ref, atol=5e-2, rtol=5e-2), "bf16 mismatch vs reference"

    print("KERNEL_OK")
</pallas_src>

<mosaic_0001>
module attributes {stable_mosaic.version = 11 : i64} {
  func.func @_flatten_head_matmul_kernel(%arg0: i32, %arg1: i32, %arg2: memref<8x128xf32, #tpu.memory_space<vmem>>, %arg3: memref<128x32xf32, #tpu.memory_space<vmem>>, %arg4: memref<1x32xf32, #tpu.memory_space<vmem>>, %arg5: memref<8x32xf32, #tpu.memory_space<vmem>>) attributes {dimension_semantics = [#tpu.dimension_semantics<parallel>, #tpu.dimension_semantics<arbitrary>], iteration_bounds = array<i64: 1, 1>, scalar_prefetch = 0 : i64, scratch_operands = 0 : i64, tpu.core_type = #tpu.core_type<tc>, window_params = [{transform_indices = @transform_0, window_bounds = array<i64: 8, 128>}, {transform_indices = @transform_1, window_bounds = array<i64: 128, 32>}, {pipeline_mode = #tpu.pipeline_mode<synchronous>, transform_indices = @transform_2, window_bounds = array<i64: 1, 32>}, {transform_indices = @transform_3, window_bounds = array<i64: 8, 32>}]} {
    %c0 = arith.constant 0 : index
    %c0_0 = arith.constant 0 : index
    %0 = vector.load %arg2[%c0, %c0_0] : memref<8x128xf32, #tpu.memory_space<vmem>>, vector<8x128xf32>
    %c0_1 = arith.constant 0 : index
    %c0_2 = arith.constant 0 : index
    %1 = vector.load %arg3[%c0_1, %c0_2] : memref<128x32xf32, #tpu.memory_space<vmem>>, vector<128x32xf32>
    %cst = arith.constant dense<0.000000e+00> : vector<8x32xf32>
    %2 = tpu.matmul %0, %1, %cst {dimension_numbers = #tpu.dot_dimension_numbers<[1], [0], [0], [1], [0, 0, 1, 1], [], []>} : vector<8x128xf32>, vector<128x32xf32>, vector<8x32xf32> -> vector<8x32xf32>
    %c0_3 = arith.constant 0 : index
    %c0_4 = arith.constant 0 : index
    %3 = vector.load %arg4[%c0_3, %c0_4] : memref<1x32xf32, #tpu.memory_space<vmem>>, vector<1x32xf32>
    %4 = vector.broadcast %3 : vector<1x32xf32> to vector<8x32xf32>
    %5 = arith.addf %2, %4 : vector<8x32xf32>
    %c0_5 = arith.constant 0 : index
    %c0_6 = arith.constant 0 : index
    %6 = vector.load %arg5[%c0_5, %c0_6] : memref<8x32xf32, #tpu.memory_space<vmem>>, vector<8x32xf32>
    tpu.vector_store %arg5[%c0_5, %c0_6], %5 {strides = array<i32>} : memref<8x32xf32, #tpu.memory_space<vmem>>, vector<8x32xf32>,
    return
  }
  func.func @transform_0(%arg0: i32, %arg1: i32) -> (i32, i32) {
    %c0_i32 = arith.constant 0 : i32
    return %arg0, %arg1 : i32, i32
  }
  func.func @transform_1(%arg0: i32, %arg1: i32) -> (i32, i32) {
    %c0_i32 = arith.constant 0 : i32
    %c0_i32_0 = arith.constant 0 : i32
    return %arg1, %c0_i32 : i32, i32
  }
  func.func @transform_2(%arg0: i32, %arg1: i32) -> (i32, i32) {
    %c0_i32 = arith.constant 0 : i32
    %c0_i32_0 = arith.constant 0 : i32
    %c0_i32_1 = arith.constant 0 : i32
    return %c0_i32, %c0_i32_0 : i32, i32
  }
  func.func @transform_3(%arg0: i32, %arg1: i32) -> (i32, i32) {
    %c0_i32 = arith.constant 0 : i32
    %c0_i32_0 = arith.constant 0 : i32
    return %arg0, %c0_i32 : i32, i32
  }
}

</mosaic_0001>

<llo_original>
// kernel: tpu_custom_call.1
$region0: #{tpu_custom_call.1}
  #allocation0 [shape = 'u32[]', space=smem, size = 0x4, offset = 0x4, fixed_abs, tag = 'smem constant byte address 0x4 - core index']
  #allocation1 [shape = 'u32[72,128]{1,0:T(1,128)}', space=vmem, size = 0x9000, scoped, tag = 'internal scratch']
  %s0 = inlined_call_operand.vmem [shape: f32[8,128], index: 0, kind: input, shape index: {}]
  %s1 = inlined_call_operand.vmem [shape: f32[128,32], index: 1, kind: input, shape index: {}]
  %s2 = inlined_call_operand.vmem [shape: f32[1,32], index: 2, kind: input, shape index: {}]
  %s3 = inlined_call_operand.hbm [shape: f32[8,32], index: 3, kind: output, shape index: {}]
  %s4 = sld [smem:[#allocation0]]
  $region22: #{tpu_custom_call.1} parent=0
    _
  %s6 = ssub.s32 1, %s4
  %s7 = scalar_select 0, %s6, %s4
  $region1: #{tpu_custom_call.1} parent=0
    #allocation2 [shape = 'u8[4096]{0}', space=vmem, size = 0x1000, scoped, tag = 'output window, operand 0, single buffered']
    #allocation3 [shape = 's32[1]{0}', space=sflag, size = 0x4, scoped, tag = 'scoped memory for tpu_custom_call.1']
    %8 = vsyncpa [#allocation3], 0
    // Predicated region
    $region2: #{tpu_custom_call.1} parent=1 // pred_check
      _
    $region3: #{tpu_custom_call.1} parent=1 // pred_check_branch
      %10 = sbr.rel (0) target = $region5
    $region4: #{tpu_custom_call.1} parent=1 // pred_region
      _
    $region5: #{tpu_custom_call.1} parent=1 // pred_fallthru
      _
    // Predicated region
    $region6: #{tpu_custom_call.1} parent=1 // pred_check
      _
    $region7: #{tpu_custom_call.1} parent=1 // pred_check_branch
      %12 = sbr.rel (0) target = $region9
    $region8: #{tpu_custom_call.1} parent=1 // pred_region
      _
    $region9: #{tpu_custom_call.1} parent=1 // pred_fallthru
      _
    // Predicated region
    $region10: #{tpu_custom_call.1} parent=1 // pred_check
      _
    $region11: #{tpu_custom_call.1} parent=1 // pred_check_branch
      %14 = sbr.rel (0) target = $region13
    $region12: #{tpu_custom_call.1} parent=1 // pred_region
      _
    $region13: #{tpu_custom_call.1} parent=1 // pred_fallthru
      _
    %v15 = vld [vmem:[%s0] sm:$0xff]
    %v16 = vld [vmem:[%s1] sm:$0xff]
    %v17 = vld [vmem:[%s1 + $0x8] sm:$0xff]
    %v18 = vld [vmem:[%s1 + $0x10] sm:$0xff]
    %v19 = vld [vmem:[%s1 + $0x18] sm:$0xff]
    %v20 = vld [vmem:[%s1 + $0x20] sm:$0xff]
    %v21 = vld [vmem:[%s1 + $0x28] sm:$0xff]
    %v22 = vld [vmem:[%s1 + $0x30] sm:$0xff]
    %v23 = vld [vmem:[%s1 + $0x38] sm:$0xff]
    %v24 = vld [vmem:[%s1 + $0x40] sm:$0xff]
    %v25 = vld [vmem:[%s1 + $0x48] sm:$0xff]
    %v26 = vld [vmem:[%s1 + $0x50] sm:$0xff]
    %v27 = vld [vmem:[%s1 + $0x58] sm:$0xff]
    %v28 = vld [vmem:[%s1 + $0x60] sm:$0xff]
    %v29 = vld [vmem:[%s1 + $0x68] sm:$0xff]
    %v30 = vld [vmem:[%s1 + $0x70] sm:$0xff]
    %v31 = vld [vmem:[%s1 + $0x78] sm:$0xff]
    %v32 = vld [vmem:[%s2] sm:$0x1]
    %v34 = vperm.slane %v32, 0
    %36 = vmatpush.msra.mxu0 %v31
    %37 = vmatpush.msra.mxu0 %v30
    %38 = vmatpush.msra.mxu0 %v29
    %39 = vmatpush.msra.mxu0 %v28
    %40 = vmatpush.msra.mxu0 %v27
    %41 = vmatpush.msra.mxu0 %v26
    %42 = vmatpush.msra.mxu0 %v25
    %43 = vmatpush.msra.mxu0 %v24
    %44 = vmatpush.msra.mxu0 %v23
    %45 = vmatpush.msra.mxu0 %v22
    %46 = vmatpush.msra.mxu0 %v21
    %47 = vmatpush.msra.mxu0 %v20
    %48 = vmatpush.msra.mxu0 %v19
    %49 = vmatpush.msra.mxu0 %v18
    %50 = vmatpush.msra.mxu0 %v17
    %51 = vmatpush.msra.mxu0 %v16
    %52 = vmatmul.f32.gmra.mxu0 %v15
    %v53 = vpop.f32.mrf.mxu0
    %v54 = vadd.f32 %v34, %v53
    %55 = vdwg.mxu0
    %vm56 = vcmask 261120
    %57 = vst.msk [vmem:[#allocation2] sm:$0xff] %vm56, %v54
    // Predicated region
    $region14: #{tpu_custom_call.1} parent=1 // pred_check
      _
    $region15: #{tpu_custom_call.1} parent=1 // pred_check_branch
      %59 = sbr.rel (0) target = $region17
    $region16: #{tpu_custom_call.1} parent=1 // pred_region
      %61 = vsyncadd [#allocation3], 0
      %s63 = sshll.u32 [#allocation2], 4
      %s64 = int_to_ptr.vmem [resolvable:$true] %s63
      %s65 = sshll.u32 %s3, 4
      %s66 = int_to_ptr.hbm [resolvable:$true] %s65
      %68 = dma.vmem_to_hbm [thread:$0]  %s64, 128, %s66, [#allocation3]
    $region17: #{tpu_custom_call.1} parent=1 // pred_fallthru
      _
    // Predicated region
    $region18: #{tpu_custom_call.1} parent=1 // pred_check
      _
    $region19: #{tpu_custom_call.1} parent=1 // pred_check_branch
      %70 = sbr.rel (0) target = $region21
    $region20: #{tpu_custom_call.1} parent=1 // pred_region
      %72 = dma.done [#allocation3], 128
    $region21: #{tpu_custom_call.1} parent=1 // pred_fallthru
      _
    %73 = vsyncpa [#allocation3], 1

</llo_original>
